<compile_context>
chip_gen: v6e
topology: v6e:2x2x1
jax: 0.10.0
libtpu: 0.0.40
codegen_flags: <defaults>
</compile_context>

<pallas_src>
import jax
import jax.numpy as jnp
from jax import lax
from jax.experimental import pallas as pl
from jax.experimental.pallas import tpu as pltpu


LN_EPS = 1e-5


def _patch_embed_kernel(a_ref, w_ref, b_ref, o_ref):
    # a_ref: (TM, K) compute dtype (bf16 default) — im2col patch rows
    # w_ref: (K, Epad) compute dtype — flattened conv weight, zero-padded cols
    # b_ref: (1, Epad) f32 — conv bias, zero-padded cols
    # o_ref: (TM, E)  — only the true E columns are stored
    e_out = o_ref.shape[-1]
    out = jnp.dot(a_ref[...], w_ref[...], preferred_element_type=jnp.float32)
    out = out + b_ref[...]
    o_ref[...] = out[:, :e_out].astype(o_ref.dtype)


def _patch_embed_ln_kernel(a_ref, w_ref, b_ref, g_ref, bt_ref, o_ref):
    # Same matmul with a fused LayerNorm over the embed dim (f32 math).
    e_out = o_ref.shape[-1]
    e_pad = w_ref.shape[-1]
    out = jnp.dot(a_ref[...], w_ref[...], preferred_element_type=jnp.float32)
    out = out + b_ref[...]                      # padded columns remain exactly 0

    inv_e = 1.0 / e_out                         # true embed dim, not padded width
    mean = jnp.sum(out, axis=-1, keepdims=True) * inv_e
    cen = out - mean
    # Centered variance (robust vs E[x^2]-mean^2); remove the exact contribution
    # of the (e_pad - e_out) zero-padded columns, whose centered value is -mean.
    ss = jnp.sum(cen * cen, axis=-1, keepdims=True) - (e_pad - e_out) * (mean * mean)
    var = ss * inv_e
    y = cen * lax.rsqrt(var + LN_EPS)
    y = y * g_ref[...] + bt_ref[...]
    o_ref[...] = y[:, :e_out].astype(o_ref.dtype)


def _choose_tm(m, block_rows):
    """Row-tile size: as large as possible (amortize ~0.35us/step overhead),
    multiple of 8 sublanes, dividing M when possible (avoids padding the whole
    im2col buffer through HBM), preferring an even step count so both v7x
    TensorCores get balanced work on the 'parallel' axis."""
    if m <= block_rows:
        return m                                   # single full block — always legal
    cands = [t for t in range(8, block_rows + 1, 8) if m % t == 0]
    if not cands:
        return max(8, (block_rows // 8) * 8)       # ragged tail — will pad
    even = [t for t in cands if (m // t) % 2 == 0]
    return max(even) if even else max(cands)


def patch_embed(x, w_conv, b_conv, *, patch_size=4, patch_stride=4, patch_pad=0,
                ln_gamma=None, ln_beta=None, block_rows=1024,
                compute_dtype=jnp.bfloat16, out_dtype=None):
    """x: (B, H, W, Cin) NHWC.  w_conv: (E, Cin, k, k) PyTorch OIHW.  b_conv: (E,).

    Returns (B, H', W', E) in `out_dtype` (defaults to x.dtype).  If
    ln_gamma/ln_beta are given, a LayerNorm(embed_dim) is fused into the kernel.
    """
    B, H, W, Cin = x.shape
    E, Cw, kh_, kw_ = w_conv.shape
    assert Cw == Cin, "conv weight channel mismatch"
    assert kh_ == patch_size and kw_ == patch_size, "square kernel expected"
    out_dtype = x.dtype if out_dtype is None else out_dtype

    if patch_pad:
        x = jnp.pad(x, ((0, 0), (patch_pad, patch_pad), (patch_pad, patch_pad), (0, 0)))
    Hp, Wp = x.shape[1], x.shape[2]

    # TODO(synk): overlapping patches (patch_stride != patch_size) not supported;
    # the default AsymTrack config uses stride == kernel (non-overlapping).
    assert patch_stride == patch_size, "only stride == kernel_size supported"
    assert Hp % patch_size == 0 and Wp % patch_size == 0, "H/W must divide patch_size"

    Ho, Wo = Hp // patch_size, Wp // patch_size
    K = patch_size * patch_size * Cin
    Epad = -(-E // 128) * 128                     # lane-dense compute width
    M = B * Ho * Wo

    # im2col (wrapper side).  Cast to the compute dtype FIRST so the transpose
    # copy moves 2-byte elements instead of 4-byte.
    xc = x.astype(compute_dtype)
    patches = xc.reshape(B, Ho, patch_size, Wo, patch_size, Cin)
    patches = patches.transpose(0, 1, 3, 2, 4, 5).reshape(M, K)

    # Conv weight (E, Cin, kh, kw) -> (kh, kw, Cin, E) -> (K, E), matching the
    # (kh, kw, c) flatten order of the patch rows; zero-pad columns to Epad.
    w_mat = jnp.transpose(w_conv, (2, 3, 1, 0)).reshape(K, E).astype(compute_dtype)
    b_mat = b_conv.reshape(1, E).astype(jnp.float32)
    if Epad != E:
        w_mat = jnp.pad(w_mat, ((0, 0), (0, Epad - E)))
        b_mat = jnp.pad(b_mat, ((0, 0), (0, Epad - E)))

    tm = _choose_tm(M, block_rows)
    Mpad = -(-M // tm) * tm
    if Mpad != M:
        patches = jnp.pad(patches, ((0, Mpad - M), (0, 0)))

    in_specs = [
        pl.BlockSpec((tm, K), lambda i: (i, 0)),        # patch rows, tiled over M
        pl.BlockSpec((K, Epad), lambda i: (0, 0)),      # weight (grid-invariant)
        pl.BlockSpec((1, Epad), lambda i: (0, 0)),      # bias   (grid-invariant)
    ]
    args = [patches, w_mat, b_mat]

    if ln_gamma is not None:
        assert ln_beta is not None
        g = ln_gamma.reshape(1, E).astype(jnp.float32)
        bt = ln_beta.reshape(1, E).astype(jnp.float32)
        if Epad != E:
            g = jnp.pad(g, ((0, 0), (0, Epad - E)))
            bt = jnp.pad(bt, ((0, 0), (0, Epad - E)))
        in_specs += [pl.BlockSpec((1, Epad), lambda i: (0, 0)),
                     pl.BlockSpec((1, Epad), lambda i: (0, 0))]
        args += [g, bt]
        kernel = _patch_embed_ln_kernel
    else:
        kernel = _patch_embed_kernel

    csize = jnp.dtype(compute_dtype).itemsize
    osize = jnp.dtype(out_dtype).itemsize
    small_bytes = Epad * 4 * (3 if ln_gamma is not None else 1)
    cost = pl.CostEstimate(
        flops=2 * Mpad * K * Epad,
        transcendentals=Mpad if ln_gamma is not None else 0,
        bytes_accessed=Mpad * K * csize + K * Epad * csize + small_bytes
                       + Mpad * E * osize,
    )

    out = pl.pallas_call(
        kernel,
        out_shape=jax.ShapeDtypeStruct((Mpad, E), out_dtype),
        grid_spec=pltpu.PrefetchScalarGridSpec(
            num_scalar_prefetch=0,
            grid=(Mpad // tm,),
            in_specs=in_specs,
            out_specs=pl.BlockSpec((tm, E), lambda i: (i, 0)),
        ),
        compiler_params=pltpu.CompilerParams(
            dimension_semantics=("parallel",),
        ),
        cost_estimate=cost,
    )(*args)

    if Mpad != M:
        out = out[:M]
    return out.reshape(B, Ho, Wo, E)


def _reference_conv(x, w_conv, b_conv, stride, pad):
    """Pure-JAX f32 reference matching the PyTorch forward (norm_layer=None)."""
    out = lax.conv_general_dilated(
        x.astype(jnp.float32),
        jnp.transpose(w_conv, (2, 3, 1, 0)).astype(jnp.float32),   # OIHW -> HWIO
        window_strides=(stride, stride),
        padding=[(pad, pad), (pad, pad)],
        dimension_numbers=("NHWC", "HWIO", "NHWC"),
    )
    return out + b_conv.reshape(1, 1, 1, -1)


if __name__ == "__main__":
    # Small shapes consistent with the module defaults:
    # in_chans=3, embed_dim=96, patch_size=4, patch_stride=4, patch_pad=0.
    B, H, W, Cin = 2, 16, 16, 3
    E, P = 96, 4

    key = jax.random.PRNGKey(0)
    kx, kw, kb, kg, kbeta = jax.random.split(key, 5)

    x = jax.random.normal(kx, (B, H, W, Cin), dtype=jnp.float32)
    w_conv = jax.random.normal(kw, (E, Cin, P, P), dtype=jnp.float32) / jnp.sqrt(
        Cin * P * P)
    b_conv = 0.02 * jax.random.normal(kb, (E,), dtype=jnp.float32)

    ref = _reference_conv(x, w_conv, b_conv, P, 0)

    # 1) f32 compute path: exact-semantics check against the conv reference.
    out_f32 = jax.block_until_ready(
        patch_embed(x, w_conv, b_conv, patch_size=P, patch_stride=P,
                    compute_dtype=jnp.float32))
    assert out_f32.shape == (B, H // P, W // P, E)
    assert jnp.allclose(out_f32, ref, atol=1e-4, rtol=1e-4), "f32 path mismatch"

    # 2) default bf16-MXU / f32-accumulate path.
    out_bf = jax.block_until_ready(
        patch_embed(x, w_conv, b_conv, patch_size=P, patch_stride=P))
    assert out_bf.shape == (B, H // P, W // P, E)
    assert jnp.allclose(out_bf, ref, atol=3e-2, rtol=3e-2), "bf16 path mismatch"

    # 3) fused LayerNorm path; small block_rows to exercise the multi-step grid.
    gamma = 1.0 + 0.1 * jax.random.normal(kg, (E,), dtype=jnp.float32)
    beta = 0.1 * jax.random.normal(kbeta, (E,), dtype=jnp.float32)
    out_ln = jax.block_until_ready(
        patch_embed(x, w_conv, b_conv, patch_size=P, patch_stride=P,
                    ln_gamma=gamma, ln_beta=beta, block_rows=8))
    mean = jnp.mean(ref, axis=-1, keepdims=True)
    var = jnp.mean((ref - mean) ** 2, axis=-1, keepdims=True)
    ref_ln = (ref - mean) / jnp.sqrt(var + LN_EPS) * gamma + beta
    assert jnp.allclose(out_ln, ref_ln, atol=5e-2, rtol=5e-2), "LN path mismatch"

    # 4) bf16 activations end-to-end (model dtype): output comes back in bf16.
    out_b16 = jax.block_until_ready(
        patch_embed(x.astype(jnp.bfloat16), w_conv.astype(jnp.bfloat16), b_conv,
                    patch_size=P, patch_stride=P))
    assert out_b16.dtype == jnp.bfloat16
    assert jnp.allclose(out_b16.astype(jnp.float32), ref, atol=5e-2, rtol=5e-2)

    print("KERNEL_OK")
</pallas_src>

<mosaic_0001>
module attributes {stable_mosaic.version = 11 : i64} {
  func.func @_patch_embed_kernel(%arg0: i32, %arg1: memref<32x48xf32, #tpu.memory_space<vmem>>, %arg2: memref<48x128xf32, #tpu.memory_space<vmem>>, %arg3: memref<1x128xf32, #tpu.memory_space<vmem>>, %arg4: memref<32x96xf32, #tpu.memory_space<vmem>>) attributes {dimension_semantics = [#tpu.dimension_semantics<parallel>], iteration_bounds = array<i64: 1>, scalar_prefetch = 0 : i64, scratch_operands = 0 : i64, tpu.core_type = #tpu.core_type<tc>, window_params = [{transform_indices = @transform_0, window_bounds = array<i64: 32, 48>}, {pipeline_mode = #tpu.pipeline_mode<synchronous>, transform_indices = @transform_1, window_bounds = array<i64: 48, 128>}, {pipeline_mode = #tpu.pipeline_mode<synchronous>, transform_indices = @transform_2, window_bounds = array<i64: 1, 128>}, {transform_indices = @transform_3, window_bounds = array<i64: 32, 96>}]} {
    %c0 = arith.constant 0 : index
    %c0_0 = arith.constant 0 : index
    %0 = vector.load %arg1[%c0, %c0_0] : memref<32x48xf32, #tpu.memory_space<vmem>>, vector<32x48xf32>
    %c0_1 = arith.constant 0 : index
    %c0_2 = arith.constant 0 : index
    %1 = vector.load %arg2[%c0_1, %c0_2] : memref<48x128xf32, #tpu.memory_space<vmem>>, vector<48x128xf32>
    %cst = arith.constant dense<0.000000e+00> : vector<32x128xf32>
    %2 = tpu.matmul %0, %1, %cst {dimension_numbers = #tpu.dot_dimension_numbers<[1], [0], [0], [1], [0, 0, 1, 1], [], []>} : vector<32x48xf32>, vector<48x128xf32>, vector<32x128xf32> -> vector<32x128xf32>
    %c0_3 = arith.constant 0 : index
    %c0_4 = arith.constant 0 : index
    %3 = vector.load %arg3[%c0_3, %c0_4] : memref<1x128xf32, #tpu.memory_space<vmem>>, vector<1x128xf32>
    %4 = vector.broadcast %3 : vector<1x128xf32> to vector<32x128xf32>
    %5 = arith.addf %2, %4 : vector<32x128xf32>
    %6 = vector.extract_strided_slice %5 {offsets = [0, 0], sizes = [32, 96], strides = [1, 1]} : vector<32x128xf32> to vector<32x96xf32>
    %c0_5 = arith.constant 0 : index
    %c0_6 = arith.constant 0 : index
    %7 = vector.load %arg4[%c0_5, %c0_6] : memref<32x96xf32, #tpu.memory_space<vmem>>, vector<32x96xf32>
    tpu.vector_store %arg4[%c0_5, %c0_6], %6 {strides = array<i32>} : memref<32x96xf32, #tpu.memory_space<vmem>>, vector<32x96xf32>,
    return
  }
  func.func @transform_0(%arg0: i32) -> (i32, i32) {
    %c0_i32 = arith.constant 0 : i32
    %c0_i32_0 = arith.constant 0 : i32
    return %arg0, %c0_i32 : i32, i32
  }
  func.func @transform_1(%arg0: i32) -> (i32, i32) {
    %c0_i32 = arith.constant 0 : i32
    %c0_i32_0 = arith.constant 0 : i32
    %c0_i32_1 = arith.constant 0 : i32
    return %c0_i32, %c0_i32_0 : i32, i32
  }
  func.func @transform_2(%arg0: i32) -> (i32, i32) {
    %c0_i32 = arith.constant 0 : i32
    %c0_i32_0 = arith.constant 0 : i32
    %c0_i32_1 = arith.constant 0 : i32
    return %c0_i32, %c0_i32_0 : i32, i32
  }
  func.func @transform_3(%arg0: i32) -> (i32, i32) {
    %c0_i32 = arith.constant 0 : i32
    %c0_i32_0 = arith.constant 0 : i32
    return %arg0, %c0_i32 : i32, i32
  }
}

</mosaic_0001>

<llo_original>
// kernel: tpu_custom_call.1
$region0: #{tpu_custom_call.1}
  #allocation0 [shape = 'u32[]', space=smem, size = 0x4, offset = 0x4, fixed_abs, tag = 'smem constant byte address 0x4 - core index']
  #allocation1 [shape = 'u32[144,128]{1,0:T(1,128)}', space=vmem, size = 0x12000, scoped, tag = 'internal scratch']
  %s0 = inlined_call_operand.hbm [shape: f32[32,48], index: 0, kind: input, shape index: {}]
  %s1 = inlined_call_operand.hbm [shape: f32[48,128], index: 1, kind: input, shape index: {}]
  %s2 = inlined_call_operand.vmem [shape: f32[1,128], index: 2, kind: input, shape index: {}]
  %s3 = inlined_call_operand.hbm [shape: f32[32,96], index: 3, kind: output, shape index: {}]
  %s4 = sld [smem:[#allocation0]]
  $region30: #{tpu_custom_call.1} parent=0
    _
  %s6 = ssub.s32 1, %s4
  %s7 = scalar_select 0, %s6, %s4
  $region1: #{tpu_custom_call.1} parent=0
    #allocation2 [shape = 'u8[16384]{0}', space=vmem, size = 0x4000, scoped, tag = 'input window, operand 0, single buffered']
    #allocation3 [shape = 's32[1]{0}', space=sflag, size = 0x4, scoped, tag = 'scoped memory for tpu_custom_call.1']
    #allocation4 [shape = 's32[1]{0}', space=sflag, size = 0x4, scoped, tag = 'scoped memory for tpu_custom_call.1']
    #allocation5 [shape = 'u8[24576]{0}', space=vmem, size = 0x6000, scoped, tag = 'input window, operand 1, single buffered']
    #allocation6 [shape = 's32[1]{0}', space=sflag, size = 0x4, scoped, tag = 'scoped memory for tpu_custom_call.1']
    #allocation7 [shape = 'u8[16384]{0}', space=vmem, size = 0x4000, scoped, tag = 'output window, operand 0, single buffered']
    %8 = vsyncpa [#allocation3], 0
    %9 = vsyncpa [#allocation6], 0
    %10 = vsyncpa [#allocation4], 0
    // Predicated region
    $region2: #{tpu_custom_call.1} parent=1 // pred_check
      _
    $region3: #{tpu_custom_call.1} parent=1 // pred_check_branch
      %12 = sbr.rel (0) target = $region5
    $region4: #{tpu_custom_call.1} parent=1 // pred_region
      %s14 = ssub.s32 512, 512
      %15 = vsyncadd [#allocation3], %s14
      %s16 = sshll.u32 [#allocation2], 4
      %s17 = int_to_ptr.vmem [resolvable:$true] %s16
      %22 = dma.hbm_to_vmem [thread:$0]  %s0, 512, %s17, [#allocation3], 128, 128, 8
    $region5: #{tpu_custom_call.1} parent=1 // pred_fallthru
      _
    // Predicated region
    $region6: #{tpu_custom_call.1} parent=1 // pred_check
      _
    $region7: #{tpu_custom_call.1} parent=1 // pred_check_branch
      %24 = sbr.rel (0) target = $region9
    $region8: #{tpu_custom_call.1} parent=1 // pred_region
      %s26 = ssub.s32 768, 768
      %27 = vsyncadd [#allocation6], %s26
      %s28 = sshll.u32 [#allocation5], 4
      %s29 = int_to_ptr.vmem [resolvable:$true] %s28
      %34 = dma.hbm_to_vmem [thread:$0]  %s1, 768, %s29, [#allocation6], 128, 128, 8
    $region9: #{tpu_custom_call.1} parent=1 // pred_fallthru
      _
    // Predicated region
    $region10: #{tpu_custom_call.1} parent=1 // pred_check
      _
    $region11: #{tpu_custom_call.1} parent=1 // pred_check_branch
      %36 = sbr.rel (0) target = $region13
    $region12: #{tpu_custom_call.1} parent=1 // pred_region
      _
    $region13: #{tpu_custom_call.1} parent=1 // pred_fallthru
      _
    // Predicated region
    $region14: #{tpu_custom_call.1} parent=1 // pred_check
      _
    $region15: #{tpu_custom_call.1} parent=1 // pred_check_branch
      %38 = sbr.rel (0) target = $region17
    $region16: #{tpu_custom_call.1} parent=1 // pred_region
      %39 = dma.done [#allocation3], 512
    $region17: #{tpu_custom_call.1} parent=1 // pred_fallthru
      _
    // Predicated region
    $region18: #{tpu_custom_call.1} parent=1 // pred_check
      _
    $region19: #{tpu_custom_call.1} parent=1 // pred_check_branch
      %41 = sbr.rel (0) target = $region21
    $region20: #{tpu_custom_call.1} parent=1 // pred_region
      %42 = dma.done [#allocation6], 768
    $region21: #{tpu_custom_call.1} parent=1 // pred_fallthru
      _
    %v43 = vld [vmem:[#allocation2] sm:$0xff]
    %v44 = vld [vmem:[#allocation2 + $0x8] sm:$0xff]
    %v45 = vld [vmem:[#allocation2 + $0x10] sm:$0xff]
    %v46 = vld [vmem:[#allocation2 + $0x18] sm:$0xff]
    %v47 = vld [vmem:[#allocation5] sm:$0xff]
    %v48 = vld [vmem:[#allocation5 + $0x8] sm:$0xff]
    %v49 = vld [vmem:[#allocation5 + $0x10] sm:$0xff]
    %v50 = vld [vmem:[#allocation5 + $0x18] sm:$0xff]
    %v51 = vld [vmem:[#allocation5 + $0x20] sm:$0xff]
    %v52 = vld [vmem:[#allocation5 + $0x28] sm:$0xff]
    %v53 = vld [vmem:[%s2] sm:$0x1]
    %v55 = vlaneseq
    %v56 = vshrl.u32 %v55, 7
    %v57 = vsub.s32 0, %v56
    %v58 = vrot.slane %v53, %v57
    %vm60 = vcmask 392192
    %v62 = vsel %vm60, %v43, 0
    %v65 = vsel %vm60, %v44, 0
    %v68 = vsel %vm60, %v45, 0
    %v71 = vsel %vm60, %v46, 0
    %73 = vmatprep.subr.mxu0 0.0
    %74 = vmatpush1.msra.mxu0 0.0
    %75 = vmatprep.subr.mxu0 0.0
    %76 = vmatpush1.msra.mxu0 0.0
    %77 = vmatprep.subr.mxu0 0.0
    %78 = vmatpush1.msra.mxu0 0.0
    %79 = vmatprep.subr.mxu0 0.0
    %80 = vmatpush1.msra.mxu0 0.0
    %81 = vmatprep.subr.mxu0 0.0
    %82 = vmatpush1.msra.mxu0 0.0
    %83 = vmatprep.subr.mxu0 0.0
    %84 = vmatpush1.msra.mxu0 0.0
    %85 = vmatprep.subr.mxu0 0.0
    %86 = vmatpush1.msra.mxu0 0.0
    %87 = vmatprep.subr.mxu0 0.0
    %88 = vmatpush1.msra.mxu0 0.0
    %89 = vmatprep.subr.mxu0 0.0
    %90 = vmatpush1.msra.mxu0 0.0
    %91 = vmatprep.subr.mxu0 0.0
    %92 = vmatpush1.msra.mxu0 0.0
    %93 = vmatprep.subr.mxu0 0.0
    %94 = vmatpush1.msra.mxu0 %v52
    %95 = vmatprep.subr.mxu0 0.0
    %96 = vmatpush1.msra.mxu0 %v51
    %97 = vmatprep.subr.mxu0 0.0
    %98 = vmatpush1.msra.mxu0 %v50
    %99 = vmatprep.subr.mxu0 0.0
    %100 = vmatpush1.msra.mxu0 %v49
    %101 = vmatprep.subr.mxu0 0.0
    %102 = vmatpush1.msra.mxu0 %v48
    %103 = vmatprep.subr.mxu0 0.0
    %104 = vmatpush1.msra.mxu0 %v47
    %105 = vmatprep.subr.mxu0 0.0
    %106 = vmatpush2.msra.mxu0 0.0
    %107 = vmatprep.subr.mxu0 0.0
    %108 = vmatpush2.msra.mxu0 0.0
    %109 = vmatprep.subr.mxu0 0.0
    %110 = vmatpush2.msra.mxu0 0.0
    %111 = vmatprep.subr.mxu0 0.0
    %112 = vmatpush2.msra.mxu0 0.0
    %113 = vmatprep.subr.mxu0 0.0
    %114 = vmatpush2.msra.mxu0 0.0
    %115 = vmatprep.subr.mxu0 0.0
    %116 = vmatpush2.msra.mxu0 0.0
    %117 = vmatprep.subr.mxu0 0.0
    %118 = vmatpush2.msra.mxu0 0.0
    %119 = vmatprep.subr.mxu0 0.0
    %120 = vmatpush2.msra.mxu0 0.0
    %121 = vmatprep.subr.mxu0 0.0
    %122 = vmatpush2.msra.mxu0 0.0
    %123 = vmatprep.subr.mxu0 0.0
    %124 = vmatpush2.msra.mxu0 0.0
    %125 = vmatprep.subr.mxu0 0.0
    %126 = vmatpush2.msra.mxu0 0.0
    %127 = vmatprep.subr.mxu0 0.0
    %128 = vmatpush2.msra.mxu0 0.0
    %129 = vmatprep.subr.mxu0 0.0
    %130 = vmatpush2.msra.mxu0 0.0
    %131 = vmatprep.subr.mxu0 0.0
    %132 = vmatpush2.msra.mxu0 0.0
    %133 = vmatprep.subr.mxu0 0.0
    %134 = vmatpush2.msra.mxu0 0.0
    %135 = vmatprep.subr.mxu0 0.0
    %136 = vmatpush2.msra.mxu0 0.0
    %137 = vmatprep.mubr.f32.mxu0 0.0
    %138 = vmatmul.mubr.f32.gmra.mxu0 %v62
    %v139 = vpop.f32.mrf.mxu0
    %v140 = vadd.f32 %v58, %v139
    %v141 = vpop.f32.mrf.mxu0
    %142 = vmatprep.mubr.f32.mxu0 0.0
    %143 = vmatmul.mubr.f32.gmra.mxu0 %v65
    %v144 = vpop.f32.mrf.mxu0
    %v145 = vadd.f32 %v58, %v144
    %v146 = vpop.f32.mrf.mxu0
    %147 = vmatprep.mubr.f32.mxu0 0.0
    %148 = vmatmul.mubr.f32.gmra.mxu0 %v68
    %v149 = vpop.f32.mrf.mxu0
    %v150 = vadd.f32 %v58, %v149
    %v151 = vpop.f32.mrf.mxu0
    %152 = vmatprep.mubr.f32.mxu0 0.0
    %153 = vmatmul.mubr.f32.gmra.mxu0 %v71
    %v154 = vpop.f32.mrf.mxu0
    %v155 = vadd.f32 %v58, %v154
    %v156 = vpop.f32.mrf.mxu0
    %157 = vdwg.mxu0
    %vm158 = vcmask 785408
    %159 = vst.msk [vmem:[#allocation7] sm:$0xff] %vm158, %v140
    %160 = vst.msk [vmem:[#allocation7 + $0x8] sm:$0xff] %vm158, %v145
    %161 = vst.msk [vmem:[#allocation7 + $0x10] sm:$0xff] %vm158, %v150
    %162 = vst.msk [vmem:[#allocation7 + $0x18] sm:$0xff] %vm158, %v155
    // Predicated region
    $region22: #{tpu_custom_call.1} parent=1 // pred_check
      _
    $region23: #{tpu_custom_call.1} parent=1 // pred_check_branch
      %164 = sbr.rel (0) target = $region25
    $region24: #{tpu_custom_call.1} parent=1 // pred_region
      %s166 = ssub.s32 512, 512
      %167 = vsyncadd [#allocation4], %s166
      %s168 = sshll.u32 [#allocation7], 4
      %s169 = int_to_ptr.vmem [resolvable:$true] %s168
      %174 = dma.vmem_to_hbm [thread:$0]  %s169, 512, %s3, [#allocation4], 128, 128, 8
    $region25: #{tpu_custom_call.1} parent=1 // pred_fallthru
      _
    // Predicated region
    $region26: #{tpu_custom_call.1} parent=1 // pred_check
      _
    $region27: #{tpu_custom_call.1} parent=1 // pred_check_branch
      %176 = sbr.rel (0) target = $region29
    $region28: #{tpu_custom_call.1} parent=1 // pred_region
      %177 = dma.done [#allocation4], 512
    $region29: #{tpu_custom_call.1} parent=1 // pred_fallthru
      _
    %178 = vsyncpa [#allocation3], 1
    %179 = vsyncpa [#allocation6], 1
    %180 = vsyncpa [#allocation4], 1

</llo_original>
